<compile_context>
chip_gen: v5e
topology: v5e:2x2
jax: 0.10.0
libtpu: 0.0.40
codegen_flags: <defaults>
</compile_context>

<pallas_src>
import functools

import jax
import jax.numpy as jnp
from jax.experimental import pallas as pl
from jax.experimental.pallas import tpu as pltpu

_LANES = 128


def _channel_attention_kernel(re_ref, im_ref, w1t_ref, b1_ref, w2t_ref, b2_ref,
                              out_ref, sum_ref, max_ref, *,
                              inv_s, true_s, tile_s, mask_tail):
    """One (batch, spatial-tile) grid step.

    re_ref/im_ref : (C, TS) tile of the flattened spatial axis (any float dtype).
    w1t_ref       : (Cr, C)  transposed first Linear weight (resident).
    b1_ref        : (Cr, 1)
    w2t_ref       : (C, Cr)  transposed second Linear weight (resident).
    b2_ref        : (C, 1)
    out_ref       : (C, 1)   sigmoid channel attention for this batch item.
    sum_ref/max_ref: (C, 128) lane-resident running sum / running max scratch.
    """
    s_idx = pl.program_id(1)

    @pl.when(s_idx == 0)
    def _init():
        sum_ref[...] = jnp.zeros_like(sum_ref)
        # magnitudes are >= 0, so 0 is a valid identity for the running max
        max_ref[...] = jnp.zeros_like(max_ref)

    c = sum_ref.shape[0]
    n_chunks = tile_s // _LANES

    if mask_tail:
        # hoisted lane iota (broadcast_in_dim is not CSE'd -> build it once)
        lane = jax.lax.broadcasted_iota(jnp.int32, (c, _LANES), 1)
        tile_start = s_idx * tile_s

    # Per-chunk magnitude keeps the live vreg set small (no full-tile (C, TS)
    # materialization / spills); 2 interleaved accumulator chains break the
    # serial sum/max dependency so the VALUs + EUP stay fed under the DMA.
    n_acc = 2 if n_chunks >= 2 else 1
    part_sums = [None] * n_acc
    part_maxs = [None] * n_acc
    for j in range(n_chunks):
        sl = slice(j * _LANES, (j + 1) * _LANES)
        re_c = re_ref[:, sl].astype(jnp.float32)
        im_c = im_ref[:, sl].astype(jnp.float32)
        m = jnp.sqrt(re_c * re_c + im_c * im_c)            # mag(x), (C, 128)
        if mask_tail:
            # out-of-bounds lanes of a partial HBM block are unspecified:
            # mask them out of BOTH the sum (0 is neutral) and the max
            # (0 cannot win because magnitudes are >= 0).
            valid = (tile_start + (j * _LANES) + lane) < true_s
            m = jnp.where(valid, m, 0.0)
        a = j % n_acc
        if part_sums[a] is None:
            part_sums[a] = m
            part_maxs[a] = m
        else:
            part_sums[a] = part_sums[a] + m
            part_maxs[a] = jnp.maximum(part_maxs[a], m)

    part_sum = part_sums[0]
    part_max = part_maxs[0]
    for a in range(1, n_acc):
        part_sum = part_sum + part_sums[a]
        part_max = jnp.maximum(part_max, part_maxs[a])

    sum_ref[...] = sum_ref[...] + part_sum
    max_ref[...] = jnp.maximum(max_ref[...], part_max)

    @pl.when(s_idx == pl.num_programs(1) - 1)
    def _finalize():
        # Single cross-lane (XLU) collapse of the lane-resident partials.
        avg = jnp.sum(sum_ref[...], axis=-1, keepdims=True) * inv_s    # (C, 1)
        mx = jnp.max(max_ref[...], axis=-1, keepdims=True)             # (C, 1)

        # Fused shared MLP: avg & max as the two columns of one (C, 2) operand.
        col = jax.lax.broadcasted_iota(jnp.int32, (avg.shape[0], 2), 1)
        pooled = jnp.where(col == 0, avg, mx)                          # (C, 2)
        h = jnp.dot(w1t_ref[...], pooled,
                    preferred_element_type=jnp.float32) + b1_ref[...]  # (Cr, 2)
        h = jnp.maximum(h, 0.0)                                        # ReLU
        y = jnp.dot(w2t_ref[...], h,
                    preferred_element_type=jnp.float32) + b2_ref[...]  # (C, 2)
        attn = jnp.sum(y, axis=-1, keepdims=True)    # mlp(avg)+mlp(max), (C,1)
        out_ref[...] = 1.0 / (1.0 + jnp.exp(-attn))  # Sigmoid


def _vmem_capacity_bytes():
    """Generation-aware VMEM size (128 MiB v5e/v6e, 64 MiB per TC on v7x)."""
    try:
        return int(pltpu.get_tpu_info().vmem_capacity_bytes)
    except Exception:
        return 64 * 1024 * 1024        # conservative (v7x per-TensorCore VMEM)


def channel_attention(x_re, x_im, w1, b1, w2, b2, *, ts_max=16384):
    """x_re, x_im: (B, C, D, H, W) float. Returns (B, C, 1, 1, 1) f32."""
    B, C, D, H, W = x_re.shape
    Cr = w1.shape[1]
    S = D * H * W

    re = x_re.reshape(B, C, S)
    im = x_im.reshape(B, C, S)

    # Degenerate tiny-spatial case only: guarantee at least one 128-lane tile.
    if S < _LANES:
        pad = ((0, 0), (0, 0), (0, _LANES - S))
        re = jnp.pad(re, pad)
        im = jnp.pad(im, pad)
    s_arr = max(S, _LANES)

    # ---- generation-aware tile sizing -------------------------------------
    vmem_cap = _vmem_capacity_bytes()
    vmem_limit = min((vmem_cap * 3) // 4, 96 * 1024 * 1024)
    stream_budget = vmem_limit // 2          # for the streamed re/im buffers
    bytes_per_lane_col = 2 * 2 * C * 4       # 2 operands x 2 pipeline buffers
    ts_cap = max(_LANES,
                 (stream_budget // bytes_per_lane_col) // _LANES * _LANES)
    s_rounded = pl.cdiv(s_arr, _LANES) * _LANES
    ts = min(s_rounded, max(_LANES, (ts_max // _LANES) * _LANES), ts_cap)
    n_s = pl.cdiv(s_arr, ts)
    # Mask the ragged final block only when the grid over-covers the true S
    # (padded region from the tiny-S guard is zeros, so it needs no mask, but
    # masking against the true S covers it anyway).
    mask_tail = (n_s * ts) != S

    # Column-oriented parameters so the finalize step needs no transposes.
    w1t = jnp.transpose(w1).astype(jnp.float32)        # (Cr, C)
    w2t = jnp.transpose(w2).astype(jnp.float32)        # (C, Cr)
    b1c = b1.reshape(Cr, 1).astype(jnp.float32)
    b2c = b2.reshape(C, 1).astype(jnp.float32)

    kernel = functools.partial(_channel_attention_kernel,
                               inv_s=1.0 / float(S), true_s=S,
                               tile_s=ts, mask_tail=mask_tail)

    in_bytes = 2 * B * C * S * re.dtype.itemsize
    cost = pl.CostEstimate(flops=int(6 * B * C * S),
                           transcendentals=int(B * C * S),
                           bytes_accessed=int(in_bytes + B * C * 4))

    attn = pl.pallas_call(
        kernel,
        out_shape=jax.ShapeDtypeStruct((B, C, 1), jnp.float32),
        grid=(B, n_s),
        in_specs=[
            pl.BlockSpec((None, C, ts), lambda b, s: (b, 0, s)),
            pl.BlockSpec((None, C, ts), lambda b, s: (b, 0, s)),
            # weights/biases: constant index_map -> DMA'd once, stay resident
            pl.BlockSpec((Cr, C), lambda b, s: (0, 0)),
            pl.BlockSpec((Cr, 1), lambda b, s: (0, 0)),
            pl.BlockSpec((C, Cr), lambda b, s: (0, 0)),
            pl.BlockSpec((C, 1), lambda b, s: (0, 0)),
        ],
        out_specs=pl.BlockSpec((None, C, 1), lambda b, s: (b, 0, 0)),
        scratch_shapes=[pltpu.VMEM((C, _LANES), jnp.float32),
                        pltpu.VMEM((C, _LANES), jnp.float32)],
        compiler_params=pltpu.CompilerParams(
            dimension_semantics=("parallel", "arbitrary"),
            vmem_limit_bytes=int(vmem_limit)),
        cost_estimate=cost,
    )(re, im, w1t, b1c, w2t, b2c)

    # match PyTorch broadcastable pooled-channel attention output
    return attn.reshape(B, C, 1, 1, 1)


def _reference(x_re, x_im, w1, b1, w2, b2):
    mag = jnp.sqrt(x_re * x_re + x_im * x_im)
    avg = mag.mean(axis=(2, 3, 4))
    mx = mag.max(axis=(2, 3, 4))

    def mlp(v):
        return jnp.maximum(v @ w1 + b1, 0.0) @ w2 + b2

    return 1.0 / (1.0 + jnp.exp(-(mlp(avg) + mlp(mx))))


if __name__ == "__main__":
    # Small shapes consistent with the module; S = 288 is NOT a multiple of the
    # 128-wide forced tile, so the in-kernel ragged-tail masking, init,
    # multi-step accumulation and finalize paths all run.
    B, C, D, H, W = 2, 32, 4, 8, 9
    reduction_ratio = 16
    Cr = C // reduction_ratio  # 2

    key = jax.random.PRNGKey(0)
    k_re, k_im, k_w1, k_b1, k_w2, k_b2 = jax.random.split(key, 6)

    x_re = jax.random.normal(k_re, (B, C, D, H, W), dtype=jnp.float32)
    x_im = jax.random.normal(k_im, (B, C, D, H, W), dtype=jnp.float32)

    # ChannelMLP parameters stored so that pooled @ w1 == PyTorch Linear(C, Cr)
    w1 = jax.random.normal(k_w1, (C, Cr), dtype=jnp.float32) * 0.1
    b1 = jax.random.normal(k_b1, (Cr,), dtype=jnp.float32) * 0.1
    w2 = jax.random.normal(k_w2, (Cr, C), dtype=jnp.float32) * 0.1
    b2 = jax.random.normal(k_b2, (C,), dtype=jnp.float32) * 0.1

    # ts_max=128 forces several spatial grid steps at this toy size, including
    # a ragged (masked) final tile.
    out = channel_attention(x_re, x_im, w1, b1, w2, b2, ts_max=128)
    jax.block_until_ready(out)
    ref = _reference(x_re, x_im, w1, b1, w2, b2)
    assert out.shape == (B, C, 1, 1, 1)
    err = float(jnp.max(jnp.abs(out.reshape(B, C) - ref)))
    assert jnp.allclose(out.reshape(B, C), ref, atol=1e-5, rtol=1e-5), err

    # Second config where S is an exact tile multiple -> unmasked fast path.
    D2, H2, W2 = 4, 8, 8   # S = 256
    x_re2 = jax.random.normal(k_re, (B, C, D2, H2, W2), dtype=jnp.float32)
    x_im2 = jax.random.normal(k_im, (B, C, D2, H2, W2), dtype=jnp.float32)
    out2 = channel_attention(x_re2, x_im2, w1, b1, w2, b2, ts_max=128)
    jax.block_until_ready(out2)
    ref2 = _reference(x_re2, x_im2, w1, b1, w2, b2)
    err2 = float(jnp.max(jnp.abs(out2.reshape(B, C) - ref2)))
    assert jnp.allclose(out2.reshape(B, C), ref2, atol=1e-5, rtol=1e-5), err2

    print("KERNEL_OK")
</pallas_src>

<mosaic_0001>
module attributes {stable_mosaic.version = 11 : i64} {
  func.func @_channel_attention_kernel(%arg0: i32, %arg1: i32, %arg2: memref<1x32x128xf32, #tpu.memory_space<vmem>>, %arg3: memref<1x32x128xf32, #tpu.memory_space<vmem>>, %arg4: memref<2x32xf32, #tpu.memory_space<vmem>>, %arg5: memref<2x1xf32, #tpu.memory_space<vmem>>, %arg6: memref<32x2xf32, #tpu.memory_space<vmem>>, %arg7: memref<32x1xf32, #tpu.memory_space<vmem>>, %arg8: memref<1x32x1xf32, #tpu.memory_space<vmem>>, %arg9: memref<32x128xf32, #tpu.memory_space<vmem>>, %arg10: memref<32x128xf32, #tpu.memory_space<vmem>>) attributes {dimension_semantics = [#tpu.dimension_semantics<parallel>, #tpu.dimension_semantics<arbitrary>], iteration_bounds = array<i64: 2, 3>, scalar_prefetch = 0 : i64, scratch_operands = 2 : i64, tpu.core_type = #tpu.core_type<tc>, window_params = [{transform_indices = @transform_0, window_bounds = array<i64: 1, 32, 128>}, {transform_indices = @transform_1, window_bounds = array<i64: 1, 32, 128>}, {pipeline_mode = #tpu.pipeline_mode<synchronous>, transform_indices = @transform_2, window_bounds = array<i64: 2, 32>}, {pipeline_mode = #tpu.pipeline_mode<synchronous>, transform_indices = @transform_3, window_bounds = array<i64: 2, 1>}, {pipeline_mode = #tpu.pipeline_mode<synchronous>, transform_indices = @transform_4, window_bounds = array<i64: 32, 2>}, {pipeline_mode = #tpu.pipeline_mode<synchronous>, transform_indices = @transform_5, window_bounds = array<i64: 32, 1>}, {transform_indices = @transform_6, window_bounds = array<i64: 1, 32, 1>}]} {
    %c0_i32 = arith.constant 0 : i32
    %0 = arith.cmpi eq, %arg1, %c0_i32 : i32
    %1 = arith.extui %0 : i1 to i32
    %c0_i32_0 = arith.constant 0 : i32
    %2 = arith.cmpi ne, %1, %c0_i32_0 : i32
    scf.if %2 {
      %cst_16 = arith.constant 0.000000e+00 : f32
      %29 = vector.broadcast %cst_16 : f32 to vector<32x128xf32>
      %c0_17 = arith.constant 0 : index
      %c0_18 = arith.constant 0 : index
      %30 = vector.load %arg9[%c0_17, %c0_18] : memref<32x128xf32, #tpu.memory_space<vmem>>, vector<32x128xf32>
      tpu.vector_store %arg9[%c0_17, %c0_18], %29 {strides = array<i32>} : memref<32x128xf32, #tpu.memory_space<vmem>>, vector<32x128xf32>,
      %cst_19 = arith.constant 0.000000e+00 : f32
      %31 = vector.broadcast %cst_19 : f32 to vector<32x128xf32>
      %c0_20 = arith.constant 0 : index
      %c0_21 = arith.constant 0 : index
      %32 = vector.load %arg10[%c0_20, %c0_21] : memref<32x128xf32, #tpu.memory_space<vmem>>, vector<32x128xf32>
      tpu.vector_store %arg10[%c0_20, %c0_21], %31 {strides = array<i32>} : memref<32x128xf32, #tpu.memory_space<vmem>>, vector<32x128xf32>,
    } else {
    }
    %3 = tpu.iota {dimensions = array<i32: 1>} : vector<32x128xi32>
    %c128_i32 = arith.constant 128 : i32
    %4 = arith.muli %arg1, %c128_i32 : i32
    %c0 = arith.constant 0 : index
    %c0_1 = arith.constant 0 : index
    %c0_2 = arith.constant 0 : index
    %5 = vector.load %arg2[%c0, %c0_1, %c0_2] : memref<1x32x128xf32, #tpu.memory_space<vmem>>, vector<1x32x128xf32>
    %6 = vector.shape_cast %5 : vector<1x32x128xf32> to vector<32x128xf32>
    %c0_3 = arith.constant 0 : index
    %c0_4 = arith.constant 0 : index
    %c0_5 = arith.constant 0 : index
    %7 = vector.load %arg3[%c0_3, %c0_4, %c0_5] : memref<1x32x128xf32, #tpu.memory_space<vmem>>, vector<1x32x128xf32>
    %8 = vector.shape_cast %7 : vector<1x32x128xf32> to vector<32x128xf32>
    %9 = arith.mulf %6, %6 : vector<32x128xf32>
    %10 = arith.mulf %8, %8 : vector<32x128xf32>
    %11 = arith.addf %9, %10 : vector<32x128xf32>
    %12 = math.sqrt %11 : vector<32x128xf32>
    %c0_i32_6 = arith.constant 0 : i32
    %13 = arith.addi %4, %c0_i32_6 : i32
    %14 = vector.broadcast %13 : i32 to vector<32x128xi32>
    %15 = arith.addi %14, %3 : vector<32x128xi32>
    %c288_i32 = arith.constant 288 : i32
    %16 = vector.broadcast %c288_i32 : i32 to vector<32x128xi32>
    %17 = arith.cmpi slt, %15, %16 : vector<32x128xi32>
    %cst = arith.constant 0.000000e+00 : f32
    %18 = vector.broadcast %cst : f32 to vector<32x128xf32>
    %19 = arith.select %17, %12, %18 : vector<32x128xi1>, vector<32x128xf32>
    %c0_7 = arith.constant 0 : index
    %c0_8 = arith.constant 0 : index
    %20 = vector.load %arg9[%c0_7, %c0_8] : memref<32x128xf32, #tpu.memory_space<vmem>>, vector<32x128xf32>
    %21 = arith.addf %20, %19 : vector<32x128xf32>
    %c0_9 = arith.constant 0 : index
    %c0_10 = arith.constant 0 : index
    %22 = vector.load %arg9[%c0_9, %c0_10] : memref<32x128xf32, #tpu.memory_space<vmem>>, vector<32x128xf32>
    tpu.vector_store %arg9[%c0_9, %c0_10], %21 {strides = array<i32>} : memref<32x128xf32, #tpu.memory_space<vmem>>, vector<32x128xf32>,
    %c0_11 = arith.constant 0 : index
    %c0_12 = arith.constant 0 : index
    %23 = vector.load %arg10[%c0_11, %c0_12] : memref<32x128xf32, #tpu.memory_space<vmem>>, vector<32x128xf32>
    %24 = arith.maximumf %23, %19 : vector<32x128xf32>
    %c0_13 = arith.constant 0 : index
    %c0_14 = arith.constant 0 : index
    %25 = vector.load %arg10[%c0_13, %c0_14] : memref<32x128xf32, #tpu.memory_space<vmem>>, vector<32x128xf32>
    tpu.vector_store %arg10[%c0_13, %c0_14], %24 {strides = array<i32>} : memref<32x128xf32, #tpu.memory_space<vmem>>, vector<32x128xf32>,
    %c2_i32 = arith.constant 2 : i32
    %26 = arith.cmpi eq, %arg1, %c2_i32 : i32
    %27 = arith.extui %26 : i1 to i32
    %c0_i32_15 = arith.constant 0 : i32
    %28 = arith.cmpi ne, %27, %c0_i32_15 : i32
    scf.if %28 {
      %c0_16 = arith.constant 0 : index
      %c0_17 = arith.constant 0 : index
      %29 = vector.load %arg9[%c0_16, %c0_17] : memref<32x128xf32, #tpu.memory_space<vmem>>, vector<32x128xf32>
      %cst_18 = arith.constant dense<0.000000e+00> : vector<32xf32>
      %30 = vector.multi_reduction <add>, %29, %cst_18 [1] : vector<32x128xf32> to vector<32xf32>
      %31 = vector.shape_cast %30 : vector<32xf32> to vector<32x1xf32>
      %cst_19 = arith.constant 0.00347222225 : f32
      %32 = vector.broadcast %cst_19 : f32 to vector<32x1xf32>
      %33 = arith.mulf %31, %32 : vector<32x1xf32>
      %c0_20 = arith.constant 0 : index
      %c0_21 = arith.constant 0 : index
      %34 = vector.load %arg10[%c0_20, %c0_21] : memref<32x128xf32, #tpu.memory_space<vmem>>, vector<32x128xf32>
      %cst_22 = arith.constant dense<0xFF800000> : vector<32xf32>
      %35 = vector.multi_reduction <maximumf>, %34, %cst_22 [1] : vector<32x128xf32> to vector<32xf32>
      %36 = vector.shape_cast %35 : vector<32xf32> to vector<32x1xf32>
      %37 = tpu.iota {dimensions = array<i32: 1>} : vector<32x2xi32>
      %c0_i32_23 = arith.constant 0 : i32
      %38 = vector.broadcast %c0_i32_23 : i32 to vector<32x2xi32>
      %39 = arith.cmpi eq, %37, %38 : vector<32x2xi32>
      %40 = vector.shape_cast %33 : vector<32x1xf32> to vector<32x1xf32>
      %41 = vector.broadcast %40 : vector<32x1xf32> to vector<32x2xf32>
      %42 = vector.shape_cast %36 : vector<32x1xf32> to vector<32x1xf32>
      %43 = vector.broadcast %42 : vector<32x1xf32> to vector<32x2xf32>
      %44 = arith.select %39, %41, %43 : vector<32x2xi1>, vector<32x2xf32>
      %c0_24 = arith.constant 0 : index
      %c0_25 = arith.constant 0 : index
      %45 = vector.load %arg4[%c0_24, %c0_25] : memref<2x32xf32, #tpu.memory_space<vmem>>, vector<2x32xf32>
      %cst_26 = arith.constant dense<0.000000e+00> : vector<2x2xf32>
      %46 = tpu.matmul %45, %44, %cst_26 {dimension_numbers = #tpu.dot_dimension_numbers<[1], [0], [0], [1], [0, 0, 1, 1], [], []>} : vector<2x32xf32>, vector<32x2xf32>, vector<2x2xf32> -> vector<2x2xf32>
      %c0_27 = arith.constant 0 : index
      %c0_28 = arith.constant 0 : index
      %47 = vector.load %arg5[%c0_27, %c0_28] : memref<2x1xf32, #tpu.memory_space<vmem>>, vector<2x1xf32>
      %48 = vector.broadcast %47 : vector<2x1xf32> to vector<2x2xf32>
      %49 = arith.addf %46, %48 : vector<2x2xf32>
      %cst_29 = arith.constant 0.000000e+00 : f32
      %50 = vector.broadcast %cst_29 : f32 to vector<2x2xf32>
      %51 = arith.maximumf %49, %50 : vector<2x2xf32>
      %c0_30 = arith.constant 0 : index
      %c0_31 = arith.constant 0 : index
      %52 = vector.load %arg6[%c0_30, %c0_31] : memref<32x2xf32, #tpu.memory_space<vmem>>, vector<32x2xf32>
      %cst_32 = arith.constant dense<0.000000e+00> : vector<32x2xf32>
      %53 = tpu.matmul %52, %51, %cst_32 {dimension_numbers = #tpu.dot_dimension_numbers<[1], [0], [0], [1], [0, 0, 1, 1], [], []>} : vector<32x2xf32>, vector<2x2xf32>, vector<32x2xf32> -> vector<32x2xf32>
      %c0_33 = arith.constant 0 : index
      %c0_34 = arith.constant 0 : index
      %54 = vector.load %arg7[%c0_33, %c0_34] : memref<32x1xf32, #tpu.memory_space<vmem>>, vector<32x1xf32>
      %55 = vector.broadcast %54 : vector<32x1xf32> to vector<32x2xf32>
      %56 = arith.addf %53, %55 : vector<32x2xf32>
      %cst_35 = arith.constant dense<0.000000e+00> : vector<32xf32>
      %57 = vector.multi_reduction <add>, %56, %cst_35 [1] : vector<32x2xf32> to vector<32xf32>
      %58 = vector.shape_cast %57 : vector<32xf32> to vector<32x1xf32>
      %cst_36 = arith.constant 0.000000e+00 : f32
      %59 = vector.broadcast %cst_36 : f32 to vector<32x1xf32>
      %60 = arith.subf %59, %58 : vector<32x1xf32>
      %61 = math.exp %60 : vector<32x1xf32>
      %cst_37 = arith.constant 1.000000e+00 : f32
      %62 = vector.broadcast %cst_37 : f32 to vector<32x1xf32>
      %63 = arith.addf %62, %61 : vector<32x1xf32>
      %cst_38 = arith.constant 1.000000e+00 : f32
      %64 = vector.broadcast %cst_38 : f32 to vector<32x1xf32>
      %65 = arith.divf %64, %63 : vector<32x1xf32>
      %c0_39 = arith.constant 0 : index
      %c0_40 = arith.constant 0 : index
      %c0_41 = arith.constant 0 : index
      %66 = vector.load %arg8[%c0_39, %c0_40, %c0_41] : memref<1x32x1xf32, #tpu.memory_space<vmem>>, vector<1x32x1xf32>
      %67 = vector.shape_cast %66 : vector<1x32x1xf32> to vector<32x1xf32>
      %68 = vector.shape_cast %65 : vector<32x1xf32> to vector<1x32x1xf32>
      tpu.vector_store %arg8[%c0_39, %c0_40, %c0_41], %68 {strides = array<i32>} : memref<1x32x1xf32, #tpu.memory_space<vmem>>, vector<1x32x1xf32>,
    } else {
    }
    return
  }
  func.func @transform_0(%arg0: i32, %arg1: i32) -> (i32, i32, i32) {
    %c0_i32 = arith.constant 0 : i32
    %c0_i32_0 = arith.constant 0 : i32
    return %arg0, %c0_i32, %arg1 : i32, i32, i32
  }
  func.func @transform_1(%arg0: i32, %arg1: i32) -> (i32, i32, i32) {
    %c0_i32 = arith.constant 0 : i32
    %c0_i32_0 = arith.constant 0 : i32
    return %arg0, %c0_i32, %arg1 : i32, i32, i32
  }
  func.func @transform_2(%arg0: i32, %arg1: i32) -> (i32, i32) {
    %c0_i32 = arith.constant 0 : i32
    %c0_i32_0 = arith.constant 0 : i32
    %c0_i32_1 = arith.constant 0 : i32
    return %c0_i32, %c0_i32_0 : i32, i32
  }
  func.func @transform_3(%arg0: i32, %arg1: i32) -> (i32, i32) {
    %c0_i32 = arith.constant 0 : i32
    %c0_i32_0 = arith.constant 0 : i32
    %c0_i32_1 = arith.constant 0 : i32
    return %c0_i32, %c0_i32_0 : i32, i32
  }
  func.func @transform_4(%arg0: i32, %arg1: i32) -> (i32, i32) {
    %c0_i32 = arith.constant 0 : i32
    %c0_i32_0 = arith.constant 0 : i32
    %c0_i32_1 = arith.constant 0 : i32
    return %c0_i32, %c0_i32_0 : i32, i32
  }
  func.func @transform_5(%arg0: i32, %arg1: i32) -> (i32, i32) {
    %c0_i32 = arith.constant 0 : i32
    %c0_i32_0 = arith.constant 0 : i32
    %c0_i32_1 = arith.constant 0 : i32
    return %c0_i32, %c0_i32_0 : i32, i32
  }
  func.func @transform_6(%arg0: i32, %arg1: i32) -> (i32, i32, i32) {
    %c0_i32 = arith.constant 0 : i32
    %c0_i32_0 = arith.constant 0 : i32
    %c0_i32_1 = arith.constant 0 : i32
    return %arg0, %c0_i32, %c0_i32_0 : i32, i32, i32
  }
}

</mosaic_0001>

<llo_original>
// kernel: tpu_custom_call.1
$region0: #{tpu_custom_call.1}
  #allocation0 [shape = 'u32[]', space=smem, size = 0x4, offset = 0x4, fixed_abs, tag = 'smem constant byte address 0x4 - core index']
  #allocation1 [shape = 'u32[72,128]{1,0:T(1,128)}', space=vmem, size = 0x9000, scoped, tag = 'internal scratch']
  #allocation2 [shape = 'f32[32,128]{1,0:T(8,128)}', space=vmem, size = 0x4000, scoped, tag = 'scratch operand']
  #allocation3 [shape = 'f32[32,128]{1,0:T(8,128)}', space=vmem, size = 0x4000, scoped, tag = 'scratch operand']
  %s0 = inlined_call_operand.hbm [shape: f32[2,32,288], index: 0, kind: input, shape index: {}]
  %s1 = inlined_call_operand.hbm [shape: f32[2,32,288], index: 1, kind: input, shape index: {}]
  %s2 = inlined_call_operand.vmem [shape: f32[2,32], index: 2, kind: input, shape index: {}]
  %s3 = inlined_call_operand.vmem [shape: f32[2,1], index: 3, kind: input, shape index: {}]
  %s4 = inlined_call_operand.vmem [shape: f32[32,2], index: 4, kind: input, shape index: {}]
  %s5 = inlined_call_operand.vmem [shape: f32[32,1], index: 5, kind: input, shape index: {}]
  %s6 = inlined_call_operand.vmem [shape: f32[2,32,1], index: 6, kind: output, shape index: {}]
  %s7 = sld [smem:[#allocation0]]
  $region73: #{tpu_custom_call.1} parent=0
    _
  %s9 = ssub.s32 1, %s7
  %s10 = scalar_select 0, %s9, %s7
  $region1: #{tpu_custom_call.1} parent=0
    #allocation4 [shape = 'u8[32768]{0}', space=vmem, size = 0x8000, scoped, tag = 'input window, operand 0']
    #allocation5 [shape = 's32[2]{0}', space=sflag, size = 0x8, scoped, tag = 'scoped memory for tpu_custom_call.1']
    #allocation6 [shape = 'u8[32768]{0}', space=vmem, size = 0x8000, scoped, tag = 'input window, operand 1']
    #allocation7 [shape = 's32[2]{0}', space=sflag, size = 0x8, scoped, tag = 'scoped memory for tpu_custom_call.1']
    %11 = vsyncpa [#allocation5], 0
    %s12 = scalar_lea.sflag [#allocation5], 1
    %13 = vsyncpa %s12, 0
    %14 = vsyncpa [#allocation7], 0
    %s15 = scalar_lea.sflag [#allocation7], 1
    %16 = vsyncpa %s15, 0
    loop: start=0, step=1, limit=8
    $region2: #{tpu_custom_call.1} parent=1 // loop_pre_header
      _
    $region3: #{tpu_custom_call.1} parent=1 // loop_header
      %s18 = sphi 0, %s22
      %p19 = scmp.ge.s32.totalorder %s18, 8
      %s25 = sphi 0, %s37
      %s26 = sphi 0, %s33
      %s27 = sphi 0, %s25
      %s28 = sphi 0, %s26
      %s29 = sphi 0, %s27
      %s30 = sphi 0, %s28
      %s42 = sphi 0, %s44
      %s45 = sphi 0, %s42
      %s46 = sphi 0, %s45
      %s62 = sphi 0, %s46
      %s70 = sphi 0, %s72
      %s73 = sphi 0, %s70
      %s74 = sphi 0, %s73
      %s90 = sphi 0, %s74
      %s94 = sphi 0, %s94
      %s96 = sphi 0, %s94
      %s97 = sphi 0, %s96
      %s111 = sphi 0, %s97
      %s115 = sphi 0, %s115
      %s117 = sphi 0, %s115
      %s118 = sphi 0, %s117
      %s132 = sphi 0, %s118
      %s136 = sphi 0, %s136
      %s138 = sphi 0, %s136
      %s139 = sphi 0, %s138
      %s153 = sphi 0, %s139
      %s157 = sphi 0, %s157
      %s159 = sphi 0, %s157
      %s160 = sphi 0, %s159
      %s174 = sphi 0, %s160
      %s180 = sphi 0, %s182
      %s183 = sphi 0, %s180
      %s184 = sphi 0, %s183
      %s200 = sphi 0, %s184
    $region4: #{tpu_custom_call.1} parent=1 // loop_header_branch
      %21 = sbr.rel (%p19) target = $region8
    $region5: #{tpu_custom_call.1} parent=1 // loop_body
      %s23 = ssub.s32 %s18, 1
      %s24 = ssub.s32 %s18, 2
      %s31 = sadd.s32 1, %s26
      %p32 = scmp.ge.s32.totalorder %s31, 3
      %s33 = scalar_select %p32, 0, %s31
      %s34 = sadd.s32 1, %s25
      %s35 = scalar_select %p32, %s34, %s25
      %p36 = scmp.ge.s32.totalorder %s35, 2
      %s37 = scalar_select %p36, 0, %s35
      %s38 = ssub.s32 %s25, %s37
      %s39 = ssub.s32 %s26, %s33
      %s40 = sor.u32 %s38, %s39
      %p41 = scmp.eq.s32.totalorder %s40, 0
      %s43 = sadd.s32 %s42, 1
      %s44 = scalar_select %p41, %s42, %s43
      %p47 = pneg %p41
      %p48 = scmp.eq.s32.totalorder %s18, 5
      %p49 = por %p47, %p48
      %p50 = scmp.ne.s32.totalorder %s42, %s45
      %p51 = scmp.eq.s32.totalorder %s18, 0
      %p52 = por %p50, %p51
      %p53 = scmp.ne.s32.totalorder %s42, %s45
      %p54 = scmp.eq.s32.totalorder %s23, 5
      %p55 = por %p53, %p54
      %p56 = scmp.ne.s32.totalorder %s45, %s46
      %p57 = scmp.eq.s32.totalorder %s23, 0
      %p58 = por %p56, %p57
      %p59 = scmp.ne.s32.totalorder %s45, %s46
      %p60 = scmp.eq.s32.totalorder %s24, 5
      %p61 = por %p59, %p60
      %p63 = scmp.ne.s32.totalorder %s46, %s62
      %p64 = scmp.eq.s32.totalorder %s24, 0
      %p65 = por %p63, %p64
      %s66 = ssub.s32 %s25, %s37
      %s67 = ssub.s32 %s26, %s33
      %s68 = sor.u32 %s66, %s67
      %p69 = scmp.eq.s32.totalorder %s68, 0
      %s71 = sadd.s32 %s70, 1
      %s72 = scalar_select %p69, %s70, %s71
      %p75 = pneg %p69
      %p76 = scmp.eq.s32.totalorder %s18, 5
      %p77 = por %p75, %p76
      %p78 = scmp.ne.s32.totalorder %s70, %s73
      %p79 = scmp.eq.s32.totalorder %s18, 0
      %p80 = por %p78, %p79
      %p81 = scmp.ne.s32.totalorder %s70, %s73
      %p82 = scmp.eq.s32.totalorder %s23, 5
      %p83 = por %p81, %p82
      %p84 = scmp.ne.s32.totalorder %s73, %s74
      %p85 = scmp.eq.s32.totalorder %s23, 0
      %p86 = por %p84, %p85
      %p87 = scmp.ne.s32.totalorder %s73, %s74
      %p88 = scmp.eq.s32.totalorder %s24, 5
      %p89 = por %p87, %p88
      %p91 = scmp.ne.s32.totalorder %s74, %s90
      %p92 = scmp.eq.s32.totalorder %s24, 0
      %p93 = por %p91, %p92
      %s95 = sadd.s32 %s94, 1
      %p98 = scmp.eq.s32.totalorder %s18, 5
      %p99 = scmp.ne.s32.totalorder %s94, %s96
      %p100 = scmp.eq.s32.totalorder %s18, 0
      %p101 = por %p99, %p100
      %p102 = scmp.ne.s32.totalorder %s94, %s96
      %p103 = scmp.eq.s32.totalorder %s23, 5
      %p104 = por %p102, %p103
      %p105 = scmp.ne.s32.totalorder %s96, %s97
      %p106 = scmp.eq.s32.totalorder %s23, 0
      %p107 = por %p105, %p106
      %p108 = scmp.ne.s32.totalorder %s96, %s97
      %p109 = scmp.eq.s32.totalorder %s24, 5
      %p110 = por %p108, %p109
      %p112 = scmp.ne.s32.totalorder %s97, %s111
      %p113 = scmp.eq.s32.totalorder %s24, 0
      %p114 = por %p112, %p113
      %s116 = sadd.s32 %s115, 1
      %p119 = scmp.eq.s32.totalorder %s18, 5
      %p120 = scmp.ne.s32.totalorder %s115, %s117
      %p121 = scmp.eq.s32.totalorder %s18, 0
      %p122 = por %p120, %p121
      %p123 = scmp.ne.s32.totalorder %s115, %s117
      %p124 = scmp.eq.s32.totalorder %s23, 5
      %p125 = por %p123, %p124
      %p126 = scmp.ne.s32.totalorder %s117, %s118
      %p127 = scmp.eq.s32.totalorder %s23, 0
      %p128 = por %p126, %p127
      %p129 = scmp.ne.s32.totalorder %s117, %s118
      %p130 = scmp.eq.s32.totalorder %s24, 5
      %p131 = por %p129, %p130
      %p133 = scmp.ne.s32.totalorder %s118, %s132
      %p134 = scmp.eq.s32.totalorder %s24, 0
      %p135 = por %p133, %p134
      %s137 = sadd.s32 %s136, 1
      %p140 = scmp.eq.s32.totalorder %s18, 5
      %p141 = scmp.ne.s32.totalorder %s136, %s138
      %p142 = scmp.eq.s32.totalorder %s18, 0
      %p143 = por %p141, %p142
      %p144 = scmp.ne.s32.totalorder %s136, %s138
      %p145 = scmp.eq.s32.totalorder %s23, 5
      %p146 = por %p144, %p145
      %p147 = scmp.ne.s32.totalorder %s138, %s139
      %p148 = scmp.eq.s32.totalorder %s23, 0
      %p149 = por %p147, %p148
      %p150 = scmp.ne.s32.totalorder %s138, %s139
      %p151 = scmp.eq.s32.totalorder %s24, 5
      %p152 = por %p150, %p151
      %p154 = scmp.ne.s32.totalorder %s139, %s153
      %p155 = scmp.eq.s32.totalorder %s24, 0
      %p156 = por %p154, %p155
      %s158 = sadd.s32 %s157, 1
      %p161 = scmp.eq.s32.totalorder %s18, 5
      %p162 = scmp.ne.s32.totalorder %s157, %s159
      %p163 = scmp.eq.s32.totalorder %s18, 0
      %p164 = por %p162, %p163
      %p165 = scmp.ne.s32.totalorder %s157, %s159
      %p166 = scmp.eq.s32.totalorder %s23, 5
      %p167 = por %p165, %p166
      %p168 = scmp.ne.s32.totalorder %s159, %s160
      %p169 = scmp.eq.s32.totalorder %s23, 0
      %p170 = por %p168, %p169
      %p171 = scmp.ne.s32.totalorder %s159, %s160
      %p172 = scmp.eq.s32.totalorder %s24, 5
      %p173 = por %p171, %p172
      %p175 = scmp.ne.s32.totalorder %s160, %s174
      %p176 = scmp.eq.s32.totalorder %s24, 0
      %p177 = por %p175, %p176
      %s178 = ssub.s32 %s25, %s37
      %p179 = scmp.eq.s32.totalorder %s178, 0
      %s181 = sadd.s32 %s180, 1
      %s182 = scalar_select %p179, %s180, %s181
      %p185 = pneg %p179
      %p186 = scmp.eq.s32.totalorder %s18, 5
      %p187 = por %p185, %p186
      %p188 = scmp.ne.s32.totalorder %s180, %s183
      %p189 = scmp.eq.s32.totalorder %s18, 0
      %p190 = por %p188, %p189
      %p191 = scmp.ne.s32.totalorder %s180, %s183
      %p192 = scmp.eq.s32.totalorder %s23, 5
      %p193 = por %p191, %p192
      %p194 = scmp.ne.s32.totalorder %s183, %s184
      %p195 = scmp.eq.s32.totalorder %s23, 0
      %p196 = por %p194, %p195
      %p197 = scmp.ne.s32.totalorder %s183, %s184
      %p198 = scmp.eq.s32.totalorder %s24, 5
      %p199 = por %p197, %p198
      %p201 = scmp.ne.s32.totalorder %s184, %s200
      %p202 = scmp.eq.s32.totalorder %s24, 0
      %p203 = por %p201, %p202
      %p204 = scmp.le.s32.totalorder 1, %s18
      %p205 = scmp.lt.s32.totalorder %s18, 7
      %p206 = pnand %p204, %p205
      %p207 = pneg %p206
      // Predicated region
      $region9: #{tpu_custom_call.1} parent=5 // pred_check
        _
      $region10: #{tpu_custom_call.1} parent=5 // pred_check_branch
        %209 = sbr.rel (%p206) target = $region12
      $region11: #{tpu_custom_call.1} parent=5 // pred_region
        %s210 = ssub.s32 %s18, 1
        // Predicated region
        $region13: #{tpu_custom_call.1} parent=11 // pred_check
          %p211 = pneg %p107
        $region14: #{tpu_custom_call.1} parent=11 // pred_check_branch
          %213 = sbr.rel (%p211) target = $region16
        $region15: #{tpu_custom_call.1} parent=11 // pred_region
          _
        $region16: #{tpu_custom_call.1} parent=11 // pred_fallthru
          _
        // Predicated region
        $region17: #{tpu_custom_call.1} parent=11 // pred_check
          %p214 = pneg %p128
        $region18: #{tpu_custom_call.1} parent=11 // pred_check_branch
          %216 = sbr.rel (%p214) target = $region20
        $region19: #{tpu_custom_call.1} parent=11 // pred_region
          _
        $region20: #{tpu_custom_call.1} parent=11 // pred_fallthru
          _
        // Predicated region
        $region21: #{tpu_custom_call.1} parent=11 // pred_check
          %p217 = pneg %p149
        $region22: #{tpu_custom_call.1} parent=11 // pred_check_branch
          %219 = sbr.rel (%p217) target = $region24
        $region23: #{tpu_custom_call.1} parent=11 // pred_region
          _
        $region24: #{tpu_custom_call.1} parent=11 // pred_fallthru
          _
        // Predicated region
        $region25: #{tpu_custom_call.1} parent=11 // pred_check
          %p220 = pneg %p170
        $region26: #{tpu_custom_call.1} parent=11 // pred_check_branch
          %222 = sbr.rel (%p220) target = $region28
        $region27: #{tpu_custom_call.1} parent=11 // pred_region
          _
        $region28: #{tpu_custom_call.1} parent=11 // pred_fallthru
          _
      $region12: #{tpu_custom_call.1} parent=5 // pred_fallthru
        _
      %p223 = scmp.lt.s32.totalorder %s18, 6
      // Predicated region
      $region29: #{tpu_custom_call.1} parent=5 // pred_check
        %p224 = pneg %p223
      $region30: #{tpu_custom_call.1} parent=5 // pred_check_branch
        %226 = sbr.rel (%p224) target = $region32
      $region31: #{tpu_custom_call.1} parent=5 // pred_region
        // Predicated region
        $region33: #{tpu_custom_call.1} parent=31 // pred_check
          %p227 = pneg %p52
        $region34: #{tpu_custom_call.1} parent=31 // pred_check_branch
          %229 = sbr.rel (%p227) target = $region36
        $region35: #{tpu_custom_call.1} parent=31 // pred_region
          %s230 = sand.u32 %s42, 1
          %s231 = scalar_lea.sflag [#allocation5], %s230
          %s232 = sand.u32 %s42, 1
          %s233 = smul.addr %s232, 32
          %s234 = scalar_lea.vmem [#allocation4], %s233
          %236 = vsyncadd %s231, 0
          %s237 = smul.addr %s25, 12
          %s238 = sadd.s32 %s26, %s237
          %s239 = smul.addr %s238, 8
          %s240 = scalar_lea.hbm %s0, %s239
          %s241 = sshll.u32 %s240, 4
          %s242 = int_to_ptr.hbm [resolvable:$true] %s241
          %s243 = sshll.u32 %s234, 4
          %s244 = int_to_ptr.vmem [resolvable:$true] %s243
          %249 = dma.hbm_to_vmem [thread:$0]  %s242, 512, %s244, %s231, 384, 128, 8
        $region36: #{tpu_custom_call.1} parent=31 // pred_fallthru
          _
        // Predicated region
        $region37: #{tpu_custom_call.1} parent=31 // pred_check
          %p250 = pneg %p80
        $region38: #{tpu_custom_call.1} parent=31 // pred_check_branch
          %252 = sbr.rel (%p250) target = $region40
        $region39: #{tpu_custom_call.1} parent=31 // pred_region
          %s253 = sand.u32 %s70, 1
          %s254 = scalar_lea.sflag [#allocation7], %s253
          %s255 = sand.u32 %s70, 1
          %s256 = smul.addr %s255, 32
          %s257 = scalar_lea.vmem [#allocation6], %s256
          %259 = vsyncadd %s254, 0
          %s260 = smul.addr %s25, 12
          %s261 = sadd.s32 %s26, %s260
          %s262 = smul.addr %s261, 8
          %s263 = scalar_lea.hbm %s1, %s262
          %s264 = sshll.u32 %s263, 4
          %s265 = int_to_ptr.hbm [resolvable:$true] %s264
          %s266 = sshll.u32 %s257, 4
          %s267 = int_to_ptr.vmem [resolvable:$true] %s266
          %272 = dma.hbm_to_vmem [thread:$0]  %s265, 512, %s267, %s254, 384, 128, 8
        $region40: #{tpu_custom_call.1} parent=31 // pred_fallthru
          _
      $region32: #{tpu_custom_call.1} parent=5 // pred_fallthru
        _
      %p273 = scmp.le.s32.totalorder 1, %s18
      %p274 = scmp.lt.s32.totalorder %s18, 7
      %p275 = pnand %p273, %p274
      %p276 = pneg %p275
      // Predicated region
      $region41: #{tpu_custom_call.1} parent=5 // pred_check
        _
      $region42: #{tpu_custom_call.1} parent=5 // pred_check_branch
        %278 = sbr.rel (%p275) target = $region44
      $region43: #{tpu_custom_call.1} parent=5 // pred_region
        %s279 = ssub.s32 %s18, 1
        %s280 = sand.u32 %s45, 1
        %s281 = scalar_lea.sflag [#allocation5], %s280
        %s282 = sand.u32 %s45, 1
        %s283 = smul.addr %s282, 32
        %s284 = scalar_lea.vmem [#allocation4], %s283
        // Predicated region
        $region45: #{tpu_custom_call.1} parent=43 // pred_check
          %p285 = pneg %p58
        $region46: #{tpu_custom_call.1} parent=43 // pred_check_branch
          %287 = sbr.rel (%p285) target = $region48
        $region47: #{tpu_custom_call.1} parent=43 // pred_region
          %289 = dma.done %s281, 512
        $region48: #{tpu_custom_call.1} parent=43 // pred_fallthru
          _
        %s290 = sand.u32 %s73, 1
        %s291 = scalar_lea.sflag [#allocation7], %s290
        %s292 = sand.u32 %s73, 1
        %s293 = smul.addr %s292, 32
        %s294 = scalar_lea.vmem [#allocation6], %s293
        // Predicated region
        $region49: #{tpu_custom_call.1} parent=43 // pred_check
          %p295 = pneg %p86
        $region50: #{tpu_custom_call.1} parent=43 // pred_check_branch
          %297 = sbr.rel (%p295) target = $region52
        $region51: #{tpu_custom_call.1} parent=43 // pred_region
          %299 = dma.done %s291, 512
        $region52: #{tpu_custom_call.1} parent=43 // pred_fallthru
          _
        %s300 = sand.u32 %s45, 1
        %s301 = scalar_lea.sflag [#allocation5], %s300
        %s302 = sand.u32 %s45, 1
        %s303 = smul.addr %s302, 32
        %s304 = scalar_lea.vmem [#allocation4], %s303
        %p305 = pneg %p58
        %p306 = pneg %p55
        %s307 = sand.u32 %s73, 1
        %s308 = scalar_lea.sflag [#allocation7], %s307
        %s309 = sand.u32 %s73, 1
        %s310 = smul.addr %s309, 32
        %s311 = scalar_lea.vmem [#allocation6], %s310
        %p312 = pneg %p86
        %p313 = pneg %p83
        %p314 = pneg %p107
        %p315 = pneg %p104
        %p316 = pneg %p128
        %p317 = pneg %p125
        %p318 = pneg %p149
        %p319 = pneg %p146
        %p320 = pneg %p170
        %p321 = pneg %p167
        %p322 = pneg %p196
        %p323 = pneg %p193
        %p324 = scmp.lt.s32.totalorder %s27, 1
        %s325 = scalar_select %p324, %s27, 1
        %s326 = smul.addr %s325, 4
        %s327 = smul.addr %s326, 8
        %s328 = scalar_lea.vmem %s6, %s327
        %p329 = scmp.lt.s32.totalorder %s27, 1
        %s330 = scalar_select %p329, %s27, 1
        %s331 = smul.addr %s330, 4
        %s332 = smul.addr %s331, 8
        %s333 = scalar_lea.vmem %s6, %s332
        %p334 = scmp.eq.s32.totalorder %s28, 0
        // Predicated region
        $region53: #{tpu_custom_call.1} parent=43 // pred_check
          %p335 = pneg %p334
        $region54: #{tpu_custom_call.1} parent=43 // pred_check_branch
          %337 = sbr.rel (%p335) target = $region56
        $region55: #{tpu_custom_call.1} parent=43 // pred_region
          %338 = vst [vmem:[#allocation2] sm:$0xff] 0.0
          %339 = vst [vmem:[#allocation2 + $0x8] sm:$0xff] 0.0
          %340 = vst [vmem:[#allocation2 + $0x10] sm:$0xff] 0.0
          %341 = vst [vmem:[#allocation2 + $0x18] sm:$0xff] 0.0
          %342 = vst [vmem:[#allocation3] sm:$0xff] 0.0
          %343 = vst [vmem:[#allocation3 + $0x8] sm:$0xff] 0.0
          %344 = vst [vmem:[#allocation3 + $0x10] sm:$0xff] 0.0
          %345 = vst [vmem:[#allocation3 + $0x18] sm:$0xff] 0.0
        $region56: #{tpu_custom_call.1} parent=43 // pred_fallthru
          _
        %v346 = vlaneseq
        %v347 = vand.u32 %v346, 127
        %s348 = smul.u32 %s28, 128
        %v349 = vld [vmem:[%s284] sm:$0xff]
        %v350 = vld [vmem:[%s284 + $0x8] sm:$0xff]
        %v351 = vld [vmem:[%s284 + $0x10] sm:$0xff]
        %v352 = vld [vmem:[%s284 + $0x18] sm:$0xff]
        %v353 = vld [vmem:[%s294] sm:$0xff]
        %v354 = vld [vmem:[%s294 + $0x8] sm:$0xff]
        %v355 = vld [vmem:[%s294 + $0x10] sm:$0xff]
        %v356 = vld [vmem:[%s294 + $0x18] sm:$0xff]
        %v357 = vmul.f32 %v349, %v349
        %v358 = vmul.f32 %v350, %v350
        %v359 = vmul.f32 %v351, %v351
        %v360 = vmul.f32 %v352, %v352
        %v361 = vmul.f32 %v353, %v353
        %v362 = vmul.f32 %v354, %v354
        %v363 = vmul.f32 %v355, %v355
        %v364 = vmul.f32 %v356, %v356
        %v365 = vadd.f32 %v357, %v361
        %v366 = vadd.f32 %v358, %v362
        %v367 = vadd.f32 %v359, %v363
        %v368 = vadd.f32 %v360, %v364
        %v369 = vrsqrt.pop %v365
        %v370 = vmul.f32 %v369, %v365
        %v371 = vmul.f32 %v370, %v369
        %v372 = vmul.f32 0.5, %v371
        %v373 = vsub.f32 1.5, %v372
        %v374 = vmul.f32 %v369, %v373
        %v375 = vmul.f32 %v365, %v374
        %vm376 = vcmp.eq.f32.partialorder %v365, inf
        %v377 = vsel %vm376, %v365, %v375
        %vm378 = vcmp.eq.f32.partialorder %v365, 0.0
        %v379 = vand.u32 %v365, 2147483648
        %v380 = vsel %vm378, %v379, %v377
        %v381 = vrsqrt.pop %v366
        %v382 = vmul.f32 %v381, %v366
        %v383 = vmul.f32 %v382, %v381
        %v384 = vmul.f32 0.5, %v383
        %v385 = vsub.f32 1.5, %v384
        %v386 = vmul.f32 %v381, %v385
        %v387 = vmul.f32 %v366, %v386
        %vm388 = vcmp.eq.f32.partialorder %v366, inf
        %v389 = vsel %vm388, %v366, %v387
        %vm390 = vcmp.eq.f32.partialorder %v366, 0.0
        %v391 = vand.u32 %v366, 2147483648
        %v392 = vsel %vm390, %v391, %v389
        %v393 = vrsqrt.pop %v367
        %v394 = vmul.f32 %v393, %v367
        %v395 = vmul.f32 %v394, %v393
        %v396 = vmul.f32 0.5, %v395
        %v397 = vsub.f32 1.5, %v396
        %v398 = vmul.f32 %v393, %v397
        %v399 = vmul.f32 %v367, %v398
        %vm400 = vcmp.eq.f32.partialorder %v367, inf
        %v401 = vsel %vm400, %v367, %v399
        %vm402 = vcmp.eq.f32.partialorder %v367, 0.0
        %v403 = vand.u32 %v367, 2147483648
        %v404 = vsel %vm402, %v403, %v401
        %v405 = vrsqrt.pop %v368
        %v406 = vmul.f32 %v405, %v368
        %v407 = vmul.f32 %v406, %v405
        %v408 = vmul.f32 0.5, %v407
        %v409 = vsub.f32 1.5, %v408
        %v410 = vmul.f32 %v405, %v409
        %v411 = vmul.f32 %v368, %v410
        %vm412 = vcmp.eq.f32.partialorder %v368, inf
        %v413 = vsel %vm412, %v368, %v411
        %vm414 = vcmp.eq.f32.partialorder %v368, 0.0
        %v415 = vand.u32 %v368, 2147483648
        %v416 = vsel %vm414, %v415, %v413
        %v417 = vstv %s348
        %v418 = vadd.s32 %v417, %v347
        %vm419 = vcmp.lt.s32.totalorder %v418, 288
        %v420 = vsel %vm419, %v380, 0.0
        %v421 = vsel %vm419, %v392, 0.0
        %v422 = vsel %vm419, %v404, 0.0
        %v423 = vsel %vm419, %v416, 0.0
        %v424 = vld [vmem:[#allocation2] sm:$0xff]
        %v425 = vld [vmem:[#allocation2 + $0x8] sm:$0xff]
        %v426 = vld [vmem:[#allocation2 + $0x10] sm:$0xff]
        %v427 = vld [vmem:[#allocation2 + $0x18] sm:$0xff]
        %v428 = vadd.f32 %v424, %v420
        %v429 = vadd.f32 %v425, %v421
        %v430 = vadd.f32 %v426, %v422
        %v431 = vadd.f32 %v427, %v423
        %432 = vst [vmem:[#allocation2] sm:$0xff] %v428
        %433 = vst [vmem:[#allocation2 + $0x8] sm:$0xff] %v429
        %434 = vst [vmem:[#allocation2 + $0x10] sm:$0xff] %v430
        %435 = vst [vmem:[#allocation2 + $0x18] sm:$0xff] %v431
        %v436 = vld [vmem:[#allocation3] sm:$0xff]
        %v437 = vld [vmem:[#allocation3 + $0x8] sm:$0xff]
        %v438 = vld [vmem:[#allocation3 + $0x10] sm:$0xff]
        %v439 = vld [vmem:[#allocation3 + $0x18] sm:$0xff]
        %v440 = vmax.f32 %v436, %v420
        %v441 = vmax.f32 %v437, %v421
        %v442 = vmax.f32 %v438, %v422
        %v443 = vmax.f32 %v439, %v423
        %444 = vst [vmem:[#allocation3] sm:$0xff] %v440
        %445 = vst [vmem:[#allocation3 + $0x8] sm:$0xff] %v441
        %446 = vst [vmem:[#allocation3 + $0x10] sm:$0xff] %v442
        %447 = vst [vmem:[#allocation3 + $0x18] sm:$0xff] %v443
        %p448 = scmp.eq.s32.totalorder %s28, 2
        // Predicated region
        $region57: #{tpu_custom_call.1} parent=43 // pred_check
          %p449 = pneg %p448
        $region58: #{tpu_custom_call.1} parent=43 // pred_check_branch
          %451 = sbr.rel (%p449) target = $region60
        $region59: #{tpu_custom_call.1} parent=43 // pred_region
          %v452 = vld [vmem:[#allocation2] sm:$0xff]
          %v453 = vld [vmem:[#allocation2 + $0x8] sm:$0xff]
          %v454 = vld [vmem:[#allocation2 + $0x10] sm:$0xff]
          %v455 = vld [vmem:[#allocation2 + $0x18] sm:$0xff]
          %456 = vadd.xlane.f32.xlu0 %v452
          %v457 = vpop.xlane.xlu0 %456
          %458 = vadd.xlane.f32.xlu0 %v453
          %v459 = vpop.xlane.xlu0 %458
          %460 = vadd.xlane.f32.xlu0 %v454
          %v461 = vpop.xlane.xlu0 %460
          %462 = vadd.xlane.f32.xlu0 %v455
          %v463 = vpop.xlane.xlu0 %462
          %v464 = vmul.f32 %v457, 0.0034722222
          %v465 = vmul.f32 %v459, 0.0034722222
          %v466 = vmul.f32 %v461, 0.0034722222
          %v467 = vmul.f32 %v463, 0.0034722222
          %v468 = vld [vmem:[#allocation3] sm:$0xff]
          %v469 = vld [vmem:[#allocation3 + $0x8] sm:$0xff]
          %v470 = vld [vmem:[#allocation3 + $0x10] sm:$0xff]
          %v471 = vld [vmem:[#allocation3 + $0x18] sm:$0xff]
          %472 = vmax.xlane.f32.xlu0 %v468
          %v473 = vpop.xlane.xlu0 %472
          %474 = vmax.xlane.f32.xlu0 %v469
          %v475 = vpop.xlane.xlu0 %474
          %476 = vmax.xlane.f32.xlu0 %v470
          %v477 = vpop.xlane.xlu0 %476
          %478 = vmax.xlane.f32.xlu0 %v471
          %v479 = vpop.xlane.xlu0 %478
          %vm480 = vcmp.eq.s32.totalorder %v347, 0
          %v481 = vsel %vm480, %v464, %v473
          %v482 = vsel %vm480, %v465, %v475
          %v483 = vsel %vm480, %v466, %v477
          %v484 = vsel %vm480, %v467, %v479
          %v485 = vld [vmem:[%s2] sm:$0x3]
          %v486 = vld [vmem:[%s3] sm:$0x3]
          %488 = vset.pattern.permute.xlu0 0
          %489 = vperm.xlu0 %488, %v486
          %v490 = vpop.permute.xlu0 %489
          %vm492 = vcmask 261120
          %v494 = vsel %vm492, %v485, 0
          %496 = vmatpush.msra.mxu0 0.0
          %497 = vmatpush.msra.mxu0 0.0
          %498 = vmatpush.msra.mxu0 0.0
          %499 = vmatpush.msra.mxu0 0.0
          %500 = vmatpush.msra.mxu0 0.0
          %501 = vmatpush.msra.mxu0 0.0
          %502 = vmatpush.msra.mxu0 0.0
          %503 = vmatpush.msra.mxu0 0.0
          %504 = vmatpush.msra.mxu0 0.0
          %505 = vmatpush.msra.mxu0 0.0
          %506 = vmatpush.msra.mxu0 0.0
          %507 = vmatpush.msra.mxu0 0.0
          %508 = vmatpush.msra.mxu0 %v484
          %509 = vmatpush.msra.mxu0 %v483
          %510 = vmatpush.msra.mxu0 %v482
          %511 = vmatpush.msra.mxu0 %v481
          %512 = vmatmul.f32.gmra.mxu0 %v494
          %v513 = vpop.f32.mrf.mxu0
          %v514 = vadd.f32 %v490, %v513
          %515 = vdwg.mxu0
          %v516 = vmax.f32 %v514, 0.0
          %v517 = vld [vmem:[%s4] sm:$0xff]
          %v518 = vld [vmem:[%s4 + $0x8] sm:$0xff]
          %v519 = vld [vmem:[%s4 + $0x10] sm:$0xff]
          %v520 = vld [vmem:[%s4 + $0x18] sm:$0xff]
          %v521 = vld [vmem:[%s5] sm:$0xff]
          %v522 = vld [vmem:[%s5 + $0x8] sm:$0xff]
          %v523 = vld [vmem:[%s5 + $0x10] sm:$0xff]
          %v524 = vld [vmem:[%s5 + $0x18] sm:$0xff]
          %526 = vset.pattern.permute.xlu0 0
          %527 = vperm.xlu0 %526, %v521
          %v528 = vpop.permute.xlu0 %527
          %531 = vset.pattern.permute.xlu0 0
          %532 = vperm.xlu0 %531, %v522
          %v533 = vpop.permute.xlu0 %532
          %536 = vset.pattern.permute.xlu0 0
          %537 = vperm.xlu0 %536, %v523
          %v538 = vpop.permute.xlu0 %537
          %541 = vset.pattern.permute.xlu0 0
          %542 = vperm.xlu0 %541, %v524
          %v543 = vpop.permute.xlu0 %542
          %vm545 = vcmask 15360
          %v547 = vsel %vm545, %v517, 0
          %v550 = vsel %vm545, %v518, 0
          %v553 = vsel %vm545, %v519, 0
          %v556 = vsel %vm545, %v520, 0
          %vm558 = vcmask 1041408
          %v560 = vsel %vm558, %v516, 0
          %562 = vmatpush.msra.mxu0 0.0
          %563 = vmatpush.msra.mxu0 0.0
          %564 = vmatpush.msra.mxu0 0.0
          %565 = vmatpush.msra.mxu0 0.0
          %566 = vmatpush.msra.mxu0 0.0
          %567 = vmatpush.msra.mxu0 0.0
          %568 = vmatpush.msra.mxu0 0.0
          %569 = vmatpush.msra.mxu0 0.0
          %570 = vmatpush.msra.mxu0 0.0
          %571 = vmatpush.msra.mxu0 0.0
          %572 = vmatpush.msra.mxu0 0.0
          %573 = vmatpush.msra.mxu0 0.0
          %574 = vmatpush.msra.mxu0 0.0
          %575 = vmatpush.msra.mxu0 0.0
          %576 = vmatpush.msra.mxu0 0.0
          %577 = vmatpush.msra.mxu0 %v560
          %578 = vmatmul.f32.gmra.mxu0 %v547
          %v579 = vpop.f32.mrf.mxu0
          %v580 = vadd.f32 %v528, %v579
          %581 = vmatmul.f32.gmra.mxu0 %v550
          %v582 = vpop.f32.mrf.mxu0
          %v583 = vadd.f32 %v533, %v582
          %584 = vmatmul.f32.gmra.mxu0 %v553
          %v585 = vpop.f32.mrf.mxu0
          %v586 = vadd.f32 %v538, %v585
          %587 = vmatmul.f32.gmra.mxu0 %v556
          %v588 = vpop.f32.mrf.mxu0
          %v589 = vadd.f32 %v543, %v588
          %590 = vdwg.mxu0
          %v591 = vsel %vm545, %v580, 0.0
          %592 = vadd.xlane.f32.xlu0 %v591
          %v593 = vpop.xlane.xlu0 %592
          %v594 = vsel %vm545, %v583, 0.0
          %595 = vadd.xlane.f32.xlu0 %v594
          %v596 = vpop.xlane.xlu0 %595
          %v597 = vsel %vm545, %v586, 0.0
          %598 = vadd.xlane.f32.xlu0 %v597
          %v599 = vpop.xlane.xlu0 %598
          %v600 = vsel %vm545, %v589, 0.0
          %601 = vadd.xlane.f32.xlu0 %v600
          %v602 = vpop.xlane.xlu0 %601
          %v603 = vsub.f32 0.0, %v593
          %v604 = vsub.f32 0.0, %v596
          %v605 = vsub.f32 0.0, %v599
          %v606 = vsub.f32 0.0, %v602
          %v607 = vmul.f32 %v603, 1.442695
          %v608 = vpow.pop %v607
          %v609 = vmul.f32 %v604, 1.442695
          %v610 = vpow.pop %v609
          %v611 = vmul.f32 %v605, 1.442695
          %v612 = vpow.pop %v611
          %v613 = vmul.f32 %v606, 1.442695
          %v614 = vpow.pop %v613
          %v615 = vadd.f32 %v608, 1.0
          %v616 = vadd.f32 %v610, 1.0
          %v617 = vadd.f32 %v612, 1.0
          %v618 = vadd.f32 %v614, 1.0
          %v619 = vrcp.pop %v615
          %v620 = vmul.f32 %v615, %v619
          %v621 = vsub.f32 1.0, %v620
          %v622 = vmul.f32 %v619, %v621
          %v623 = vadd.f32 %v619, %v622
          %vm624 = vweird.f32 %v615
          %vm625 = vweird.f32 %v619
          %vm626 = vmor %vm624, %vm625
          %v627 = vsel %vm626, %v619, %v623
          %v628 = vand.u32 2147483647, %v615
          %vm629 = vcmp.eq.f32.partialorder %v628, 8.507059e+37
          %v630 = vand.u32 %v615, 2147483648
          %v631 = vor.u32 1.1754944e-38, %v630
          %v632 = vsel %vm629, %v631, %v627
          %v633 = vmul.f32 1.0, %v632
          %v634 = vrcp.pop %v616
          %v635 = vmul.f32 %v616, %v634
          %v636 = vsub.f32 1.0, %v635
          %v637 = vmul.f32 %v634, %v636
          %v638 = vadd.f32 %v634, %v637
          %vm639 = vweird.f32 %v616
          %vm640 = vweird.f32 %v634
          %vm641 = vmor %vm639, %vm640
          %v642 = vsel %vm641, %v634, %v638
          %v643 = vand.u32 2147483647, %v616
          %vm644 = vcmp.eq.f32.partialorder %v643, 8.507059e+37
          %v645 = vand.u32 %v616, 2147483648
          %v646 = vor.u32 1.1754944e-38, %v645
          %v647 = vsel %vm644, %v646, %v642
          %v648 = vmul.f32 1.0, %v647
          %v649 = vrcp.pop %v617
          %v650 = vmul.f32 %v617, %v649
          %v651 = vsub.f32 1.0, %v650
          %v652 = vmul.f32 %v649, %v651
          %v653 = vadd.f32 %v649, %v652
          %vm654 = vweird.f32 %v617
          %vm655 = vweird.f32 %v649
          %vm656 = vmor %vm654, %vm655
          %v657 = vsel %vm656, %v649, %v653
          %v658 = vand.u32 2147483647, %v617
          %vm659 = vcmp.eq.f32.partialorder %v658, 8.507059e+37
          %v660 = vand.u32 %v617, 2147483648
          %v661 = vor.u32 1.1754944e-38, %v660
          %v662 = vsel %vm659, %v661, %v657
          %v663 = vmul.f32 1.0, %v662
          %v664 = vrcp.pop %v618
          %v665 = vmul.f32 %v618, %v664
          %v666 = vsub.f32 1.0, %v665
          %v667 = vmul.f32 %v664, %v666
          %v668 = vadd.f32 %v664, %v667
          %vm669 = vweird.f32 %v618
          %vm670 = vweird.f32 %v664
          %vm671 = vmor %vm669, %vm670
          %v672 = vsel %vm671, %v664, %v668
          %v673 = vand.u32 2147483647, %v618
          %vm674 = vcmp.eq.f32.partialorder %v673, 8.507059e+37
          %v675 = vand.u32 %v618, 2147483648
          %v676 = vor.u32 1.1754944e-38, %v675
          %v677 = vsel %vm674, %v676, %v672
          %v678 = vmul.f32 1.0, %v677
          %vm679 = vcmask 7168
          %680 = vst.msk [vmem:[%s333] sm:$0xff] %vm679, %v633
          %681 = vst.msk [vmem:[%s333 + $0x8] sm:$0xff] %vm679, %v648
          %682 = vst.msk [vmem:[%s333 + $0x10] sm:$0xff] %vm679, %v663
          %683 = vst.msk [vmem:[%s333 + $0x18] sm:$0xff] %vm679, %v678
        $region60: #{tpu_custom_call.1} parent=43 // pred_fallthru
          _
        %p684 = scmp.lt.s32.totalorder %s27, 1
        %s685 = scalar_select %p684, %s27, 1
        %s686 = smul.addr %s685, 4
        %s687 = smul.addr %s686, 8
        %s688 = scalar_lea.vmem %s6, %s687
        // Predicated region
        $region61: #{tpu_custom_call.1} parent=43 // pred_check
          %p689 = pneg %p193
        $region62: #{tpu_custom_call.1} parent=43 // pred_check_branch
          %691 = sbr.rel (%p689) target = $region64
        $region63: #{tpu_custom_call.1} parent=43 // pred_region
          _
        $region64: #{tpu_custom_call.1} parent=43 // pred_fallthru
          _
      $region44: #{tpu_custom_call.1} parent=5 // pred_fallthru
        _
      %p692 = scmp.le.s32.totalorder 2, %s18
      // Predicated region
      $region65: #{tpu_custom_call.1} parent=5 // pred_check
        %p693 = pneg %p692
      $region66: #{tpu_custom_call.1} parent=5 // pred_check_branch
        %695 = sbr.rel (%p693) target = $region68
      $region67: #{tpu_custom_call.1} parent=5 // pred_region
        %s696 = ssub.s32 %s18, 2
        // Predicated region
        $region69: #{tpu_custom_call.1} parent=67 // pred_check
          %p697 = pneg %p199
        $region70: #{tpu_custom_call.1} parent=67 // pred_check_branch
          %699 = sbr.rel (%p697) target = $region72
        $region71: #{tpu_custom_call.1} parent=67 // pred_region
          %p700 = scmp.lt.s32.totalorder %s29, 1
          %s701 = scalar_select %p700, %s29, 1
          %s702 = smul.addr %s701, 4
          %s703 = smul.addr %s702, 8
          %s704 = scalar_lea.vmem %s6, %s703
        $region72: #{tpu_custom_call.1} parent=67 // pred_fallthru
          _
      $region68: #{tpu_custom_call.1} parent=5 // pred_fallthru
        _
    $region6: #{tpu_custom_call.1} parent=1 // loop_footer
      %s22 = sadd.s32 1, %s18
    $region7: #{tpu_custom_call.1} parent=1 // loop_footer_branch
      %17 = sbr.rel target = $region3
    $region8: #{tpu_custom_call.1} parent=1 // loop_exit
      _
    %705 = vsyncpa [#allocation5], 1
    %s706 = scalar_lea.sflag [#allocation5], 1
    %707 = vsyncpa %s706, 1
    %708 = vsyncpa [#allocation7], 1
    %s709 = scalar_lea.sflag [#allocation7], 1
    %710 = vsyncpa %s709, 1

</llo_original>
